<compile_context>
chip_gen: v5e
topology: v5e:2x2
jax: 0.10.0
libtpu: 0.0.40
codegen_flags: <defaults>
</compile_context>

<pallas_src>
import functools

import jax
import jax.numpy as jnp
from jax import lax
from jax.experimental import pallas as pl
from jax.experimental.pallas import tpu as pltpu

N_CLASS_PAD = 128  # lane-dense padded class dimension


def cnn_simple_kernel(tok_ref, toknext_ref, emb2_ref, convw_ref, convb_ref,
                      w1_ref, b1_ref, w2_ref, b2_ref, out_ref, *, batch, length):
    f32 = jnp.float32
    BL = batch * length
    V2 = emb2_ref.shape[0]       # 2 * vocab
    H = emb2_ref.shape[1] // 2   # hidden size

    # ---- Fused embedding gather for tokens t and t+1 (one one-hot matmul). ----
    # tok_ref holds ids in [0, V); toknext_ref holds (next-token id + V), so a
    # single (BL, 2V) one-hot against the block-diagonal table
    # emb2 = blockdiag(E, E) yields concat(E[tok_t], E[tok_{t+1}]) directly.
    vocab_iota = lax.broadcasted_iota(jnp.int32, (BL, V2), 1)
    onehot = jnp.logical_or(vocab_iota == tok_ref[...],
                            vocab_iota == toknext_ref[...]).astype(f32)
    x_cat = jnp.dot(onehot, emb2_ref[...], preferred_element_type=f32)   # (BL, 2H)

    # ---- Conv1d(H, H, kernel_size=2) as ONE 2D matmul over all B*L rows. ----
    y = jnp.dot(x_cat, convw_ref[...], preferred_element_type=f32) + convb_ref[...]

    # TODO(synk): nn.Dropout(p=0.25) is identity at inference; training-mode
    # stochastic masking is not reproduced here.

    # ---- ReLU, mask the invalid t = L-1 rows ('valid' conv), max-pool over t. ----
    y = jnp.maximum(y, 0.0)
    # L is a multiple of 8, so this reshape is a tile-aligned layout no-op.
    y = y.reshape(batch, length, H)
    t_idx = lax.broadcasted_iota(jnp.int32, (batch, length, H), 1)
    y = jnp.where(t_idx < (length - 1), y, 0.0)   # safe: post-ReLU values are >= 0
    feat = jnp.max(y, axis=1)                     # (B, H)

    # ---- Linear(H, H) with eval-mode BatchNorm1d folded in, then ReLU. ----
    h = jnp.dot(feat, w1_ref[...], preferred_element_type=f32) + b1_ref[...]
    h = jnp.maximum(h, 0.0)

    # ---- Linear(H, 5) padded to 128 lanes + Softmax (padded logits = -1e30). ----
    logits = jnp.dot(h, w2_ref[...], preferred_element_type=f32) + b2_ref[...]
    m = jnp.max(logits, axis=-1, keepdims=True)
    e = jnp.exp(logits - m)
    out_ref[...] = e * pl.reciprocal(jnp.sum(e, axis=-1, keepdims=True), approx=False)


@jax.jit
def cnn_simple_forward(tokens, params):
    """tokens: (B, L) int32.  Returns softmax probabilities (B, n_classes)."""
    emb = params["embedding"]                      # (V, H) float32
    B, L = tokens.shape
    V, H = emb.shape
    n_classes = params["w2"].shape[1]
    assert L >= 2, "Conv1d(kernel_size=2) requires L >= 2"
    f32 = jnp.float32

    # Token ids for conv taps t and t+1 (flat over B*L; the wrapped row at
    # t = L-1 of each batch is masked inside the kernel before the max-pool).
    tok = tokens.reshape(B * L, 1).astype(jnp.int32)
    tok_next = jnp.roll(tok, shift=-1, axis=0) + V      # offset into 2nd diag block

    # Weight-only layout folds (no per-call activation preprocessing):
    #  * block-diagonal embedding table (gathers both taps in one matmul),
    #  * conv taps concatenated into a single (2H, H) matrix,
    #  * eval-mode BatchNorm folded into Linear1,
    #  * final Linear padded to 128 output lanes (padded logits pinned at -1e30).
    emb2 = jnp.zeros((2 * V, 2 * H), f32).at[:V, :H].set(emb).at[V:, H:].set(emb)
    w_conv = jnp.concatenate([params["conv_w"][0], params["conv_w"][1]], axis=0)  # (2H, H)
    w1f = params["w1"] * params["bn_scale"]
    b1f = params["b1"] * params["bn_scale"] + params["bn_shift"]
    w2p = jnp.zeros((H, N_CLASS_PAD), f32).at[:, :n_classes].set(params["w2"])
    b2p = jnp.full((1, N_CLASS_PAD), -1e30, f32).at[:, :n_classes].set(params["b2"])

    kernel = functools.partial(cnn_simple_kernel, batch=B, length=L)
    zero2 = lambda i: (0, 0)

    out = pl.pallas_call(
        kernel,
        out_shape=jax.ShapeDtypeStruct((B, N_CLASS_PAD), f32),
        grid_spec=pltpu.PrefetchScalarGridSpec(
            num_scalar_prefetch=0,
            grid=(1,),                                    # whole problem in one step
            in_specs=[
                pl.BlockSpec((B * L, 1), zero2),          # token ids (tap 0)
                pl.BlockSpec((B * L, 1), zero2),          # token ids + V (tap 1)
                pl.BlockSpec((2 * V, 2 * H), zero2),      # block-diag embedding
                pl.BlockSpec((2 * H, H), zero2),          # conv taps (2H, H)
                pl.BlockSpec((1, H), zero2),              # conv bias
                pl.BlockSpec((H, H), zero2),              # W1^T (BN folded)
                pl.BlockSpec((1, H), zero2),              # b1 (BN folded)
                pl.BlockSpec((H, N_CLASS_PAD), zero2),    # W2^T, lane-padded
                pl.BlockSpec((1, N_CLASS_PAD), zero2),    # b2, lane-padded
            ],
            out_specs=pl.BlockSpec((B, N_CLASS_PAD), zero2),
        ),
        compiler_params=pltpu.CompilerParams(
            dimension_semantics=("arbitrary",)),
    )(tok, tok_next, emb2, w_conv, params["conv_b"], w1f, b1f, w2p, b2p)
    return out[:, :n_classes]


def cnn_simple_reference(tokens, params):
    """Pure-JAX reference of the PyTorch module (eval mode)."""
    x = jnp.take(params["embedding"], tokens, axis=0)            # (B, L, H)
    y = (jnp.einsum('bti,io->bto', x[:, :-1, :], params["conv_w"][0])
         + jnp.einsum('bti,io->bto', x[:, 1:, :], params["conv_w"][1])
         + params["conv_b"])
    y = jnp.maximum(y, 0.0)
    feat = jnp.max(y, axis=1)
    h = feat @ params["w1"] + params["b1"]
    h = h * params["bn_scale"] + params["bn_shift"]
    h = jnp.maximum(h, 0.0)
    logits = h @ params["w2"] + params["b2"]
    return jax.nn.softmax(logits, axis=-1)


def init_params(key, n_tokens, hid_size, n_classes=5):
    ks = jax.random.split(key, 6)
    f32 = jnp.float32
    H = hid_size
    # nn.Embedding(n_tokens, H)
    embedding = jax.random.normal(ks[0], (n_tokens, H), f32)
    # nn.Conv1d(H, H, kernel_size=2): torch weight (out, in, k) -> taps (k, in, out)
    conv_w_torch = jax.random.normal(ks[1], (H, H, 2), f32) * (1.0 / jnp.sqrt(2.0 * H))
    conv_w = jnp.stack([conv_w_torch[:, :, 0].T, conv_w_torch[:, :, 1].T], axis=0)
    conv_b = jax.random.normal(ks[2], (1, H), f32) * 0.02
    # nn.Linear(H, H): torch weight (out, in); kernel uses W^T (in, out)
    w1 = (jax.random.normal(ks[3], (H, H), f32) * (1.0 / jnp.sqrt(H))).T
    b1 = jnp.zeros((1, H), f32)
    # nn.BatchNorm1d(H), eval: running_mean=0, running_var=1, gamma=1, beta=0
    eps = 1e-5
    gamma = jnp.ones((1, H), f32)
    beta = jnp.zeros((1, H), f32)
    running_mean = jnp.zeros((1, H), f32)
    running_var = jnp.ones((1, H), f32)
    bn_scale = gamma / jnp.sqrt(running_var + eps)
    bn_shift = beta - running_mean * bn_scale
    # nn.Linear(H, 5)
    w2 = (jax.random.normal(ks[4], (n_classes, H), f32) * (1.0 / jnp.sqrt(H))).T
    b2 = jax.random.normal(ks[5], (1, n_classes), f32) * 0.02
    return dict(embedding=embedding, conv_w=conv_w, conv_b=conv_b,
                w1=w1, b1=b1, bn_scale=bn_scale, bn_shift=bn_shift,
                w2=w2, b2=b2)


if __name__ == "__main__":
    key = jax.random.PRNGKey(0)
    k_par, k_tok = jax.random.split(key)

    n_tokens, hid_size = 64, 32
    B, L = 16, 16                                  # batch, joke length

    params = init_params(k_par, n_tokens, hid_size)
    tokens = jax.random.randint(k_tok, (B, L), 0, n_tokens, dtype=jnp.int32)

    probs = cnn_simple_forward(tokens, params)
    probs = jax.block_until_ready(probs)

    assert probs.shape == (B, 5)
    assert bool(jnp.all(jnp.isfinite(probs)))
    assert bool(jnp.allclose(jnp.sum(probs, axis=-1), 1.0, atol=1e-5))

    ref = cnn_simple_reference(tokens, params)
    assert bool(jnp.allclose(probs, ref, rtol=1e-4, atol=1e-4))

    print("KERNEL_OK")
</pallas_src>

<mosaic_0001>
module attributes {stable_mosaic.version = 11 : i64} {
  func.func @cnn_simple_kernel(%arg0: i32, %arg1: memref<256x1xi32, #tpu.memory_space<vmem>>, %arg2: memref<256x1xi32, #tpu.memory_space<vmem>>, %arg3: memref<128x64xf32, #tpu.memory_space<vmem>>, %arg4: memref<64x32xf32, #tpu.memory_space<vmem>>, %arg5: memref<1x32xf32, #tpu.memory_space<vmem>>, %arg6: memref<32x32xf32, #tpu.memory_space<vmem>>, %arg7: memref<1x32xf32, #tpu.memory_space<vmem>>, %arg8: memref<32x128xf32, #tpu.memory_space<vmem>>, %arg9: memref<1x128xf32, #tpu.memory_space<vmem>>, %arg10: memref<16x128xf32, #tpu.memory_space<vmem>>) attributes {dimension_semantics = [#tpu.dimension_semantics<arbitrary>], iteration_bounds = array<i64: 1>, scalar_prefetch = 0 : i64, scratch_operands = 0 : i64, tpu.core_type = #tpu.core_type<tc>, window_params = [{pipeline_mode = #tpu.pipeline_mode<synchronous>, transform_indices = @transform_0, window_bounds = array<i64: 256, 1>}, {pipeline_mode = #tpu.pipeline_mode<synchronous>, transform_indices = @transform_1, window_bounds = array<i64: 256, 1>}, {pipeline_mode = #tpu.pipeline_mode<synchronous>, transform_indices = @transform_2, window_bounds = array<i64: 128, 64>}, {pipeline_mode = #tpu.pipeline_mode<synchronous>, transform_indices = @transform_3, window_bounds = array<i64: 64, 32>}, {pipeline_mode = #tpu.pipeline_mode<synchronous>, transform_indices = @transform_4, window_bounds = array<i64: 1, 32>}, {pipeline_mode = #tpu.pipeline_mode<synchronous>, transform_indices = @transform_5, window_bounds = array<i64: 32, 32>}, {pipeline_mode = #tpu.pipeline_mode<synchronous>, transform_indices = @transform_6, window_bounds = array<i64: 1, 32>}, {pipeline_mode = #tpu.pipeline_mode<synchronous>, transform_indices = @transform_7, window_bounds = array<i64: 32, 128>}, {pipeline_mode = #tpu.pipeline_mode<synchronous>, transform_indices = @transform_8, window_bounds = array<i64: 1, 128>}, {pipeline_mode = #tpu.pipeline_mode<synchronous>, transform_indices = @transform_9, window_bounds = array<i64: 16, 128>}]} {
    %0 = tpu.iota {dimensions = array<i32: 1>} : vector<256x128xi32>
    %c0 = arith.constant 0 : index
    %c0_0 = arith.constant 0 : index
    %1 = vector.load %arg1[%c0, %c0_0] : memref<256x1xi32, #tpu.memory_space<vmem>>, vector<256x1xi32>
    %2 = vector.broadcast %1 : vector<256x1xi32> to vector<256x128xi32>
    %3 = arith.cmpi eq, %0, %2 : vector<256x128xi32>
    %c0_1 = arith.constant 0 : index
    %c0_2 = arith.constant 0 : index
    %4 = vector.load %arg2[%c0_1, %c0_2] : memref<256x1xi32, #tpu.memory_space<vmem>>, vector<256x1xi32>
    %5 = vector.broadcast %4 : vector<256x1xi32> to vector<256x128xi32>
    %6 = arith.cmpi eq, %0, %5 : vector<256x128xi32>
    %7 = arith.ori %3, %6 : vector<256x128xi1>
    %8 = arith.extui %7 : vector<256x128xi1> to vector<256x128xi32>
    %9 = arith.sitofp %8 : vector<256x128xi32> to vector<256x128xf32>
    %c0_3 = arith.constant 0 : index
    %c0_4 = arith.constant 0 : index
    %10 = vector.load %arg3[%c0_3, %c0_4] : memref<128x64xf32, #tpu.memory_space<vmem>>, vector<128x64xf32>
    %cst = arith.constant dense<0.000000e+00> : vector<256x64xf32>
    %11 = tpu.matmul %9, %10, %cst {dimension_numbers = #tpu.dot_dimension_numbers<[1], [0], [0], [1], [0, 0, 1, 1], [], []>} : vector<256x128xf32>, vector<128x64xf32>, vector<256x64xf32> -> vector<256x64xf32>
    %c0_5 = arith.constant 0 : index
    %c0_6 = arith.constant 0 : index
    %12 = vector.load %arg4[%c0_5, %c0_6] : memref<64x32xf32, #tpu.memory_space<vmem>>, vector<64x32xf32>
    %cst_7 = arith.constant dense<0.000000e+00> : vector<256x32xf32>
    %13 = tpu.matmul %11, %12, %cst_7 {dimension_numbers = #tpu.dot_dimension_numbers<[1], [0], [0], [1], [0, 0, 1, 1], [], []>} : vector<256x64xf32>, vector<64x32xf32>, vector<256x32xf32> -> vector<256x32xf32>
    %c0_8 = arith.constant 0 : index
    %c0_9 = arith.constant 0 : index
    %14 = vector.load %arg5[%c0_8, %c0_9] : memref<1x32xf32, #tpu.memory_space<vmem>>, vector<1x32xf32>
    %15 = vector.broadcast %14 : vector<1x32xf32> to vector<256x32xf32>
    %16 = arith.addf %13, %15 : vector<256x32xf32>
    %cst_10 = arith.constant 0.000000e+00 : f32
    %17 = vector.broadcast %cst_10 : f32 to vector<256x32xf32>
    %18 = arith.maximumf %16, %17 : vector<256x32xf32>
    %19 = vector.shape_cast %18 : vector<256x32xf32> to vector<16x16x32xf32>
    %20 = tpu.iota {dimensions = array<i32: 1>} : vector<16x16x32xi32>
    %c15_i32 = arith.constant 15 : i32
    %21 = vector.broadcast %c15_i32 : i32 to vector<16x16x32xi32>
    %22 = arith.cmpi slt, %20, %21 : vector<16x16x32xi32>
    %cst_11 = arith.constant 0.000000e+00 : f32
    %23 = vector.broadcast %cst_11 : f32 to vector<16x16x32xf32>
    %24 = arith.select %22, %19, %23 : vector<16x16x32xi1>, vector<16x16x32xf32>
    %cst_12 = arith.constant dense<0xFF800000> : vector<16x32xf32>
    %25 = vector.multi_reduction <maximumf>, %24, %cst_12 [1] : vector<16x16x32xf32> to vector<16x32xf32>
    %c0_13 = arith.constant 0 : index
    %c0_14 = arith.constant 0 : index
    %26 = vector.load %arg6[%c0_13, %c0_14] : memref<32x32xf32, #tpu.memory_space<vmem>>, vector<32x32xf32>
    %cst_15 = arith.constant dense<0.000000e+00> : vector<16x32xf32>
    %27 = tpu.matmul %25, %26, %cst_15 {dimension_numbers = #tpu.dot_dimension_numbers<[1], [0], [0], [1], [0, 0, 1, 1], [], []>} : vector<16x32xf32>, vector<32x32xf32>, vector<16x32xf32> -> vector<16x32xf32>
    %c0_16 = arith.constant 0 : index
    %c0_17 = arith.constant 0 : index
    %28 = vector.load %arg7[%c0_16, %c0_17] : memref<1x32xf32, #tpu.memory_space<vmem>>, vector<1x32xf32>
    %29 = vector.broadcast %28 : vector<1x32xf32> to vector<16x32xf32>
    %30 = arith.addf %27, %29 : vector<16x32xf32>
    %cst_18 = arith.constant 0.000000e+00 : f32
    %31 = vector.broadcast %cst_18 : f32 to vector<16x32xf32>
    %32 = arith.maximumf %30, %31 : vector<16x32xf32>
    %c0_19 = arith.constant 0 : index
    %c0_20 = arith.constant 0 : index
    %33 = vector.load %arg8[%c0_19, %c0_20] : memref<32x128xf32, #tpu.memory_space<vmem>>, vector<32x128xf32>
    %cst_21 = arith.constant dense<0.000000e+00> : vector<16x128xf32>
    %34 = tpu.matmul %32, %33, %cst_21 {dimension_numbers = #tpu.dot_dimension_numbers<[1], [0], [0], [1], [0, 0, 1, 1], [], []>} : vector<16x32xf32>, vector<32x128xf32>, vector<16x128xf32> -> vector<16x128xf32>
    %c0_22 = arith.constant 0 : index
    %c0_23 = arith.constant 0 : index
    %35 = vector.load %arg9[%c0_22, %c0_23] : memref<1x128xf32, #tpu.memory_space<vmem>>, vector<1x128xf32>
    %36 = vector.broadcast %35 : vector<1x128xf32> to vector<16x128xf32>
    %37 = arith.addf %34, %36 : vector<16x128xf32>
    %cst_24 = arith.constant dense<0xFF800000> : vector<16xf32>
    %38 = vector.multi_reduction <maximumf>, %37, %cst_24 [1] : vector<16x128xf32> to vector<16xf32>
    %39 = vector.shape_cast %38 : vector<16xf32> to vector<16x1xf32>
    %40 = vector.broadcast %39 : vector<16x1xf32> to vector<16x128xf32>
    %41 = arith.subf %37, %40 : vector<16x128xf32>
    %42 = math.exp %41 : vector<16x128xf32>
    %cst_25 = arith.constant dense<0.000000e+00> : vector<16xf32>
    %43 = vector.multi_reduction <add>, %42, %cst_25 [1] : vector<16x128xf32> to vector<16xf32>
    %44 = vector.shape_cast %43 : vector<16xf32> to vector<16x1xf32>
    %45 = tpu.reciprocal %44 : vector<16x1xf32> -> vector<16x1xf32>
    %46 = vector.broadcast %45 : vector<16x1xf32> to vector<16x128xf32>
    %47 = arith.mulf %42, %46 : vector<16x128xf32>
    %c0_26 = arith.constant 0 : index
    %c0_27 = arith.constant 0 : index
    %48 = vector.load %arg10[%c0_26, %c0_27] : memref<16x128xf32, #tpu.memory_space<vmem>>, vector<16x128xf32>
    tpu.vector_store %arg10[%c0_26, %c0_27], %47 {strides = array<i32>} : memref<16x128xf32, #tpu.memory_space<vmem>>, vector<16x128xf32>,
    return
  }
  func.func @transform_0(%arg0: i32) -> (i32, i32) {
    %c0_i32 = arith.constant 0 : i32
    %c0_i32_0 = arith.constant 0 : i32
    %c0_i32_1 = arith.constant 0 : i32
    return %c0_i32, %c0_i32_0 : i32, i32
  }
  func.func @transform_1(%arg0: i32) -> (i32, i32) {
    %c0_i32 = arith.constant 0 : i32
    %c0_i32_0 = arith.constant 0 : i32
    %c0_i32_1 = arith.constant 0 : i32
    return %c0_i32, %c0_i32_0 : i32, i32
  }
  func.func @transform_2(%arg0: i32) -> (i32, i32) {
    %c0_i32 = arith.constant 0 : i32
    %c0_i32_0 = arith.constant 0 : i32
    %c0_i32_1 = arith.constant 0 : i32
    return %c0_i32, %c0_i32_0 : i32, i32
  }
  func.func @transform_3(%arg0: i32) -> (i32, i32) {
    %c0_i32 = arith.constant 0 : i32
    %c0_i32_0 = arith.constant 0 : i32
    %c0_i32_1 = arith.constant 0 : i32
    return %c0_i32, %c0_i32_0 : i32, i32
  }
  func.func @transform_4(%arg0: i32) -> (i32, i32) {
    %c0_i32 = arith.constant 0 : i32
    %c0_i32_0 = arith.constant 0 : i32
    %c0_i32_1 = arith.constant 0 : i32
    return %c0_i32, %c0_i32_0 : i32, i32
  }
  func.func @transform_5(%arg0: i32) -> (i32, i32) {
    %c0_i32 = arith.constant 0 : i32
    %c0_i32_0 = arith.constant 0 : i32
    %c0_i32_1 = arith.constant 0 : i32
    return %c0_i32, %c0_i32_0 : i32, i32
  }
  func.func @transform_6(%arg0: i32) -> (i32, i32) {
    %c0_i32 = arith.constant 0 : i32
    %c0_i32_0 = arith.constant 0 : i32
    %c0_i32_1 = arith.constant 0 : i32
    return %c0_i32, %c0_i32_0 : i32, i32
  }
  func.func @transform_7(%arg0: i32) -> (i32, i32) {
    %c0_i32 = arith.constant 0 : i32
    %c0_i32_0 = arith.constant 0 : i32
    %c0_i32_1 = arith.constant 0 : i32
    return %c0_i32, %c0_i32_0 : i32, i32
  }
  func.func @transform_8(%arg0: i32) -> (i32, i32) {
    %c0_i32 = arith.constant 0 : i32
    %c0_i32_0 = arith.constant 0 : i32
    %c0_i32_1 = arith.constant 0 : i32
    return %c0_i32, %c0_i32_0 : i32, i32
  }
  func.func @transform_9(%arg0: i32) -> (i32, i32) {
    %c0_i32 = arith.constant 0 : i32
    %c0_i32_0 = arith.constant 0 : i32
    %c0_i32_1 = arith.constant 0 : i32
    return %c0_i32, %c0_i32_0 : i32, i32
  }
}

</mosaic_0001>

<llo_original>
// kernel: cnn_simple_forward.1
$region0: #{cnn_simple_forward.1}
  #allocation0 [shape = 'u32[]', space=smem, size = 0x4, offset = 0x4, fixed_abs, tag = 'smem constant byte address 0x4 - core index']
  #allocation1 [shape = 'u32[72,128]{1,0:T(1,128)}', space=vmem, size = 0x9000, scoped, tag = 'internal scratch']
  %s0 = inlined_call_operand.vmem [shape: s32[256,1], index: 0, kind: input, shape index: {}]
  %s1 = inlined_call_operand.vmem [shape: s32[256,1], index: 1, kind: input, shape index: {}]
  %s2 = inlined_call_operand.vmem [shape: f32[128,64], index: 2, kind: input, shape index: {}]
  %s3 = inlined_call_operand.vmem [shape: f32[64,32], index: 3, kind: input, shape index: {}]
  %s4 = inlined_call_operand.vmem [shape: f32[1,32], index: 4, kind: input, shape index: {}]
  %s5 = inlined_call_operand.vmem [shape: f32[32,32], index: 5, kind: input, shape index: {}]
  %s6 = inlined_call_operand.vmem [shape: f32[1,32], index: 6, kind: input, shape index: {}]
  %s7 = inlined_call_operand.vmem [shape: f32[32,128], index: 7, kind: input, shape index: {}]
  %s8 = inlined_call_operand.vmem [shape: f32[1,128], index: 8, kind: input, shape index: {}]
  %s9 = inlined_call_operand.vmem [shape: f32[16,128], index: 9, kind: output, shape index: {}]
  %s10 = sld [smem:[#allocation0]]
  $region46: #{cnn_simple_forward.1} parent=0
    _
  %s12 = ssub.s32 1, %s10
  %s13 = scalar_select 0, %s12, %s10
  // Predicated region
  $region2: #{cnn_simple_forward.1} parent=0 // pred_check
    _
  $region3: #{cnn_simple_forward.1} parent=0 // pred_check_branch
    %15 = sbr.rel (0) target = $region5
  $region4: #{cnn_simple_forward.1} parent=0 // pred_region
    _
  $region5: #{cnn_simple_forward.1} parent=0 // pred_fallthru
    _
  // Predicated region
  $region6: #{cnn_simple_forward.1} parent=0 // pred_check
    _
  $region7: #{cnn_simple_forward.1} parent=0 // pred_check_branch
    %17 = sbr.rel (0) target = $region9
  $region8: #{cnn_simple_forward.1} parent=0 // pred_region
    _
  $region9: #{cnn_simple_forward.1} parent=0 // pred_fallthru
    _
  // Predicated region
  $region10: #{cnn_simple_forward.1} parent=0 // pred_check
    _
  $region11: #{cnn_simple_forward.1} parent=0 // pred_check_branch
    %19 = sbr.rel (0) target = $region13
  $region12: #{cnn_simple_forward.1} parent=0 // pred_region
    _
  $region13: #{cnn_simple_forward.1} parent=0 // pred_fallthru
    _
  // Predicated region
  $region14: #{cnn_simple_forward.1} parent=0 // pred_check
    _
  $region15: #{cnn_simple_forward.1} parent=0 // pred_check_branch
    %21 = sbr.rel (0) target = $region17
  $region16: #{cnn_simple_forward.1} parent=0 // pred_region
    _
  $region17: #{cnn_simple_forward.1} parent=0 // pred_fallthru
    _
  // Predicated region
  $region18: #{cnn_simple_forward.1} parent=0 // pred_check
    _
  $region19: #{cnn_simple_forward.1} parent=0 // pred_check_branch
    %23 = sbr.rel (0) target = $region21
  $region20: #{cnn_simple_forward.1} parent=0 // pred_region
    _
  $region21: #{cnn_simple_forward.1} parent=0 // pred_fallthru
    _
  // Predicated region
  $region22: #{cnn_simple_forward.1} parent=0 // pred_check
    _
  $region23: #{cnn_simple_forward.1} parent=0 // pred_check_branch
    %25 = sbr.rel (0) target = $region25
  $region24: #{cnn_simple_forward.1} parent=0 // pred_region
    _
  $region25: #{cnn_simple_forward.1} parent=0 // pred_fallthru
    _
  // Predicated region
  $region26: #{cnn_simple_forward.1} parent=0 // pred_check
    _
  $region27: #{cnn_simple_forward.1} parent=0 // pred_check_branch
    %27 = sbr.rel (0) target = $region29
  $region28: #{cnn_simple_forward.1} parent=0 // pred_region
    _
  $region29: #{cnn_simple_forward.1} parent=0 // pred_fallthru
    _
  // Predicated region
  $region30: #{cnn_simple_forward.1} parent=0 // pred_check
    _
  $region31: #{cnn_simple_forward.1} parent=0 // pred_check_branch
    %29 = sbr.rel (0) target = $region33
  $region32: #{cnn_simple_forward.1} parent=0 // pred_region
    _
  $region33: #{cnn_simple_forward.1} parent=0 // pred_fallthru
    _
  // Predicated region
  $region34: #{cnn_simple_forward.1} parent=0 // pred_check
    _
  $region35: #{cnn_simple_forward.1} parent=0 // pred_check_branch
    %31 = sbr.rel (0) target = $region37
  $region36: #{cnn_simple_forward.1} parent=0 // pred_region
    _
  $region37: #{cnn_simple_forward.1} parent=0 // pred_fallthru
    _
  %v32 = vlaneseq
  %v33 = vand.u32 %v32, 127
  %v34 = vld [vmem:[%s0] sm:$0xff]
  %v35 = vld [vmem:[%s0 + $0x8] sm:$0xff]
  %v36 = vld [vmem:[%s0 + $0x10] sm:$0xff]
  %v37 = vld [vmem:[%s0 + $0x18] sm:$0xff]
  %v38 = vld [vmem:[%s0 + $0x20] sm:$0xff]
  %v39 = vld [vmem:[%s0 + $0x28] sm:$0xff]
  %v40 = vld [vmem:[%s0 + $0x30] sm:$0xff]
  %v41 = vld [vmem:[%s0 + $0x38] sm:$0xff]
  %v42 = vld [vmem:[%s0 + $0x40] sm:$0xff]
  %v43 = vld [vmem:[%s0 + $0x48] sm:$0xff]
  %v44 = vld [vmem:[%s0 + $0x50] sm:$0xff]
  %v45 = vld [vmem:[%s0 + $0x58] sm:$0xff]
  %v46 = vld [vmem:[%s0 + $0x60] sm:$0xff]
  %v47 = vld [vmem:[%s0 + $0x68] sm:$0xff]
  %v48 = vld [vmem:[%s0 + $0x70] sm:$0xff]
  %v49 = vld [vmem:[%s0 + $0x78] sm:$0xff]
  %v50 = vld [vmem:[%s0 + $0x80] sm:$0xff]
  %v51 = vld [vmem:[%s0 + $0x88] sm:$0xff]
  %v52 = vld [vmem:[%s0 + $0x90] sm:$0xff]
  %v53 = vld [vmem:[%s0 + $0x98] sm:$0xff]
  %v54 = vld [vmem:[%s0 + $0xa0] sm:$0xff]
  %v55 = vld [vmem:[%s0 + $0xa8] sm:$0xff]
  %v56 = vld [vmem:[%s0 + $0xb0] sm:$0xff]
  %v57 = vld [vmem:[%s0 + $0xb8] sm:$0xff]
  %v58 = vld [vmem:[%s0 + $0xc0] sm:$0xff]
  %v59 = vld [vmem:[%s0 + $0xc8] sm:$0xff]
  %v60 = vld [vmem:[%s0 + $0xd0] sm:$0xff]
  %v61 = vld [vmem:[%s0 + $0xd8] sm:$0xff]
  %v62 = vld [vmem:[%s0 + $0xe0] sm:$0xff]
  %v63 = vld [vmem:[%s0 + $0xe8] sm:$0xff]
  %v64 = vld [vmem:[%s0 + $0xf0] sm:$0xff]
  %v65 = vld [vmem:[%s0 + $0xf8] sm:$0xff]
  %66 = vset.pattern.permute.xlu0 0
  %67 = vperm.xlu0 %66, %v34
  %v68 = vpop.permute.xlu0 %67
  %69 = vset.pattern.permute.xlu0 0
  %70 = vperm.xlu0 %69, %v35
  %v71 = vpop.permute.xlu0 %70
  %72 = vset.pattern.permute.xlu0 0
  %73 = vperm.xlu0 %72, %v36
  %v74 = vpop.permute.xlu0 %73
  %75 = vset.pattern.permute.xlu0 0
  %76 = vperm.xlu0 %75, %v37
  %v77 = vpop.permute.xlu0 %76
  %78 = vset.pattern.permute.xlu0 0
  %79 = vperm.xlu0 %78, %v38
  %v80 = vpop.permute.xlu0 %79
  %81 = vset.pattern.permute.xlu0 0
  %82 = vperm.xlu0 %81, %v39
  %v83 = vpop.permute.xlu0 %82
  %84 = vset.pattern.permute.xlu0 0
  %85 = vperm.xlu0 %84, %v40
  %v86 = vpop.permute.xlu0 %85
  %87 = vset.pattern.permute.xlu0 0
  %88 = vperm.xlu0 %87, %v41
  %v89 = vpop.permute.xlu0 %88
  %90 = vset.pattern.permute.xlu0 0
  %91 = vperm.xlu0 %90, %v42
  %v92 = vpop.permute.xlu0 %91
  %93 = vset.pattern.permute.xlu0 0
  %94 = vperm.xlu0 %93, %v43
  %v95 = vpop.permute.xlu0 %94
  %96 = vset.pattern.permute.xlu0 0
  %97 = vperm.xlu0 %96, %v44
  %v98 = vpop.permute.xlu0 %97
  %99 = vset.pattern.permute.xlu0 0
  %100 = vperm.xlu0 %99, %v45
  %v101 = vpop.permute.xlu0 %100
  %102 = vset.pattern.permute.xlu0 0
  %103 = vperm.xlu0 %102, %v46
  %v104 = vpop.permute.xlu0 %103
  %105 = vset.pattern.permute.xlu0 0
  %106 = vperm.xlu0 %105, %v47
  %v107 = vpop.permute.xlu0 %106
  %108 = vset.pattern.permute.xlu0 0
  %109 = vperm.xlu0 %108, %v48
  %v110 = vpop.permute.xlu0 %109
  %111 = vset.pattern.permute.xlu0 0
  %112 = vperm.xlu0 %111, %v49
  %v113 = vpop.permute.xlu0 %112
  %114 = vset.pattern.permute.xlu0 0
  %115 = vperm.xlu0 %114, %v50
  %v116 = vpop.permute.xlu0 %115
  %117 = vset.pattern.permute.xlu0 0
  %118 = vperm.xlu0 %117, %v51
  %v119 = vpop.permute.xlu0 %118
  %120 = vset.pattern.permute.xlu0 0
  %121 = vperm.xlu0 %120, %v52
  %v122 = vpop.permute.xlu0 %121
  %123 = vset.pattern.permute.xlu0 0
  %124 = vperm.xlu0 %123, %v53
  %v125 = vpop.permute.xlu0 %124
  %126 = vset.pattern.permute.xlu0 0
  %127 = vperm.xlu0 %126, %v54
  %v128 = vpop.permute.xlu0 %127
  %129 = vset.pattern.permute.xlu0 0
  %130 = vperm.xlu0 %129, %v55
  %v131 = vpop.permute.xlu0 %130
  %132 = vset.pattern.permute.xlu0 0
  %133 = vperm.xlu0 %132, %v56
  %v134 = vpop.permute.xlu0 %133
  %135 = vset.pattern.permute.xlu0 0
  %136 = vperm.xlu0 %135, %v57
  %v137 = vpop.permute.xlu0 %136
  %138 = vset.pattern.permute.xlu0 0
  %139 = vperm.xlu0 %138, %v58
  %v140 = vpop.permute.xlu0 %139
  %141 = vset.pattern.permute.xlu0 0
  %142 = vperm.xlu0 %141, %v59
  %v143 = vpop.permute.xlu0 %142
  %144 = vset.pattern.permute.xlu0 0
  %145 = vperm.xlu0 %144, %v60
  %v146 = vpop.permute.xlu0 %145
  %147 = vset.pattern.permute.xlu0 0
  %148 = vperm.xlu0 %147, %v61
  %v149 = vpop.permute.xlu0 %148
  %150 = vset.pattern.permute.xlu0 0
  %151 = vperm.xlu0 %150, %v62
  %v152 = vpop.permute.xlu0 %151
  %153 = vset.pattern.permute.xlu0 0
  %154 = vperm.xlu0 %153, %v63
  %v155 = vpop.permute.xlu0 %154
  %156 = vset.pattern.permute.xlu0 0
  %157 = vperm.xlu0 %156, %v64
  %v158 = vpop.permute.xlu0 %157
  %159 = vset.pattern.permute.xlu0 0
  %160 = vperm.xlu0 %159, %v65
  %v161 = vpop.permute.xlu0 %160
  %vm162 = vcmp.eq.s32.totalorder %v33, %v68
  %vm163 = vcmp.eq.s32.totalorder %v33, %v71
  %vm164 = vcmp.eq.s32.totalorder %v33, %v74
  %vm165 = vcmp.eq.s32.totalorder %v33, %v77
  %vm166 = vcmp.eq.s32.totalorder %v33, %v80
  %vm167 = vcmp.eq.s32.totalorder %v33, %v83
  %vm168 = vcmp.eq.s32.totalorder %v33, %v86
  %vm169 = vcmp.eq.s32.totalorder %v33, %v89
  %vm170 = vcmp.eq.s32.totalorder %v33, %v92
  %vm171 = vcmp.eq.s32.totalorder %v33, %v95
  %vm172 = vcmp.eq.s32.totalorder %v33, %v98
  %vm173 = vcmp.eq.s32.totalorder %v33, %v101
  %vm174 = vcmp.eq.s32.totalorder %v33, %v104
  %vm175 = vcmp.eq.s32.totalorder %v33, %v107
  %vm176 = vcmp.eq.s32.totalorder %v33, %v110
  %vm177 = vcmp.eq.s32.totalorder %v33, %v113
  %vm178 = vcmp.eq.s32.totalorder %v33, %v116
  %vm179 = vcmp.eq.s32.totalorder %v33, %v119
  %vm180 = vcmp.eq.s32.totalorder %v33, %v122
  %vm181 = vcmp.eq.s32.totalorder %v33, %v125
  %vm182 = vcmp.eq.s32.totalorder %v33, %v128
  %vm183 = vcmp.eq.s32.totalorder %v33, %v131
  %vm184 = vcmp.eq.s32.totalorder %v33, %v134
  %vm185 = vcmp.eq.s32.totalorder %v33, %v137
  %vm186 = vcmp.eq.s32.totalorder %v33, %v140
  %vm187 = vcmp.eq.s32.totalorder %v33, %v143
  %vm188 = vcmp.eq.s32.totalorder %v33, %v146
  %vm189 = vcmp.eq.s32.totalorder %v33, %v149
  %vm190 = vcmp.eq.s32.totalorder %v33, %v152
  %vm191 = vcmp.eq.s32.totalorder %v33, %v155
  %vm192 = vcmp.eq.s32.totalorder %v33, %v158
  %vm193 = vcmp.eq.s32.totalorder %v33, %v161
  %v194 = vld [vmem:[%s1] sm:$0xff]
  %v195 = vld [vmem:[%s1 + $0x8] sm:$0xff]
  %v196 = vld [vmem:[%s1 + $0x10] sm:$0xff]
  %v197 = vld [vmem:[%s1 + $0x18] sm:$0xff]
  %v198 = vld [vmem:[%s1 + $0x20] sm:$0xff]
  %v199 = vld [vmem:[%s1 + $0x28] sm:$0xff]
  %v200 = vld [vmem:[%s1 + $0x30] sm:$0xff]
  %v201 = vld [vmem:[%s1 + $0x38] sm:$0xff]
  %v202 = vld [vmem:[%s1 + $0x40] sm:$0xff]
  %v203 = vld [vmem:[%s1 + $0x48] sm:$0xff]
  %v204 = vld [vmem:[%s1 + $0x50] sm:$0xff]
  %v205 = vld [vmem:[%s1 + $0x58] sm:$0xff]
  %v206 = vld [vmem:[%s1 + $0x60] sm:$0xff]
  %v207 = vld [vmem:[%s1 + $0x68] sm:$0xff]
  %v208 = vld [vmem:[%s1 + $0x70] sm:$0xff]
  %v209 = vld [vmem:[%s1 + $0x78] sm:$0xff]
  %v210 = vld [vmem:[%s1 + $0x80] sm:$0xff]
  %v211 = vld [vmem:[%s1 + $0x88] sm:$0xff]
  %v212 = vld [vmem:[%s1 + $0x90] sm:$0xff]
  %v213 = vld [vmem:[%s1 + $0x98] sm:$0xff]
  %v214 = vld [vmem:[%s1 + $0xa0] sm:$0xff]
  %v215 = vld [vmem:[%s1 + $0xa8] sm:$0xff]
  %v216 = vld [vmem:[%s1 + $0xb0] sm:$0xff]
  %v217 = vld [vmem:[%s1 + $0xb8] sm:$0xff]
  %v218 = vld [vmem:[%s1 + $0xc0] sm:$0xff]
  %v219 = vld [vmem:[%s1 + $0xc8] sm:$0xff]
  %v220 = vld [vmem:[%s1 + $0xd0] sm:$0xff]
  %v221 = vld [vmem:[%s1 + $0xd8] sm:$0xff]
  %v222 = vld [vmem:[%s1 + $0xe0] sm:$0xff]
  %v223 = vld [vmem:[%s1 + $0xe8] sm:$0xff]
  %v224 = vld [vmem:[%s1 + $0xf0] sm:$0xff]
  %v225 = vld [vmem:[%s1 + $0xf8] sm:$0xff]
  %226 = vset.pattern.permute.xlu0 0
  %227 = vperm.xlu0 %226, %v194
  %v228 = vpop.permute.xlu0 %227
  %229 = vset.pattern.permute.xlu0 0
  %230 = vperm.xlu0 %229, %v195
  %v231 = vpop.permute.xlu0 %230
  %232 = vset.pattern.permute.xlu0 0
  %233 = vperm.xlu0 %232, %v196
  %v234 = vpop.permute.xlu0 %233
  %235 = vset.pattern.permute.xlu0 0
  %236 = vperm.xlu0 %235, %v197
  %v237 = vpop.permute.xlu0 %236
  %238 = vset.pattern.permute.xlu0 0
  %239 = vperm.xlu0 %238, %v198
  %v240 = vpop.permute.xlu0 %239
  %241 = vset.pattern.permute.xlu0 0
  %242 = vperm.xlu0 %241, %v199
  %v243 = vpop.permute.xlu0 %242
  %244 = vset.pattern.permute.xlu0 0
  %245 = vperm.xlu0 %244, %v200
  %v246 = vpop.permute.xlu0 %245
  %247 = vset.pattern.permute.xlu0 0
  %248 = vperm.xlu0 %247, %v201
  %v249 = vpop.permute.xlu0 %248
  %250 = vset.pattern.permute.xlu0 0
  %251 = vperm.xlu0 %250, %v202
  %v252 = vpop.permute.xlu0 %251
  %253 = vset.pattern.permute.xlu0 0
  %254 = vperm.xlu0 %253, %v203
  %v255 = vpop.permute.xlu0 %254
  %256 = vset.pattern.permute.xlu0 0
  %257 = vperm.xlu0 %256, %v204
  %v258 = vpop.permute.xlu0 %257
  %259 = vset.pattern.permute.xlu0 0
  %260 = vperm.xlu0 %259, %v205
  %v261 = vpop.permute.xlu0 %260
  %262 = vset.pattern.permute.xlu0 0
  %263 = vperm.xlu0 %262, %v206
  %v264 = vpop.permute.xlu0 %263
  %265 = vset.pattern.permute.xlu0 0
  %266 = vperm.xlu0 %265, %v207
  %v267 = vpop.permute.xlu0 %266
  %268 = vset.pattern.permute.xlu0 0
  %269 = vperm.xlu0 %268, %v208
  %v270 = vpop.permute.xlu0 %269
  %271 = vset.pattern.permute.xlu0 0
  %272 = vperm.xlu0 %271, %v209
  %v273 = vpop.permute.xlu0 %272
  %274 = vset.pattern.permute.xlu0 0
  %275 = vperm.xlu0 %274, %v210
  %v276 = vpop.permute.xlu0 %275
  %277 = vset.pattern.permute.xlu0 0
  %278 = vperm.xlu0 %277, %v211
  %v279 = vpop.permute.xlu0 %278
  %280 = vset.pattern.permute.xlu0 0
  %281 = vperm.xlu0 %280, %v212
  %v282 = vpop.permute.xlu0 %281
  %283 = vset.pattern.permute.xlu0 0
  %284 = vperm.xlu0 %283, %v213
  %v285 = vpop.permute.xlu0 %284
  %286 = vset.pattern.permute.xlu0 0
  %287 = vperm.xlu0 %286, %v214
  %v288 = vpop.permute.xlu0 %287
  %289 = vset.pattern.permute.xlu0 0
  %290 = vperm.xlu0 %289, %v215
  %v291 = vpop.permute.xlu0 %290
  %292 = vset.pattern.permute.xlu0 0
  %293 = vperm.xlu0 %292, %v216
  %v294 = vpop.permute.xlu0 %293
  %295 = vset.pattern.permute.xlu0 0
  %296 = vperm.xlu0 %295, %v217
  %v297 = vpop.permute.xlu0 %296
  %298 = vset.pattern.permute.xlu0 0
  %299 = vperm.xlu0 %298, %v218
  %v300 = vpop.permute.xlu0 %299
  %301 = vset.pattern.permute.xlu0 0
  %302 = vperm.xlu0 %301, %v219
  %v303 = vpop.permute.xlu0 %302
  %304 = vset.pattern.permute.xlu0 0
  %305 = vperm.xlu0 %304, %v220
  %v306 = vpop.permute.xlu0 %305
  %307 = vset.pattern.permute.xlu0 0
  %308 = vperm.xlu0 %307, %v221
  %v309 = vpop.permute.xlu0 %308
  %310 = vset.pattern.permute.xlu0 0
  %311 = vperm.xlu0 %310, %v222
  %v312 = vpop.permute.xlu0 %311
  %313 = vset.pattern.permute.xlu0 0
  %314 = vperm.xlu0 %313, %v223
  %v315 = vpop.permute.xlu0 %314
  %316 = vset.pattern.permute.xlu0 0
  %317 = vperm.xlu0 %316, %v224
  %v318 = vpop.permute.xlu0 %317
  %319 = vset.pattern.permute.xlu0 0
  %320 = vperm.xlu0 %319, %v225
  %v321 = vpop.permute.xlu0 %320
  %vm322 = vcmp.eq.s32.totalorder %v33, %v228
  %vm323 = vcmp.eq.s32.totalorder %v33, %v231
  %vm324 = vcmp.eq.s32.totalorder %v33, %v234
  %vm325 = vcmp.eq.s32.totalorder %v33, %v237
  %vm326 = vcmp.eq.s32.totalorder %v33, %v240
  %vm327 = vcmp.eq.s32.totalorder %v33, %v243
  %vm328 = vcmp.eq.s32.totalorder %v33, %v246
  %vm329 = vcmp.eq.s32.totalorder %v33, %v249
  %vm330 = vcmp.eq.s32.totalorder %v33, %v252
  %vm331 = vcmp.eq.s32.totalorder %v33, %v255
  %vm332 = vcmp.eq.s32.totalorder %v33, %v258
  %vm333 = vcmp.eq.s32.totalorder %v33, %v261
  %vm334 = vcmp.eq.s32.totalorder %v33, %v264
  %vm335 = vcmp.eq.s32.totalorder %v33, %v267
  %vm336 = vcmp.eq.s32.totalorder %v33, %v270
  %vm337 = vcmp.eq.s32.totalorder %v33, %v273
  %vm338 = vcmp.eq.s32.totalorder %v33, %v276
  %vm339 = vcmp.eq.s32.totalorder %v33, %v279
  %vm340 = vcmp.eq.s32.totalorder %v33, %v282
  %vm341 = vcmp.eq.s32.totalorder %v33, %v285
  %vm342 = vcmp.eq.s32.totalorder %v33, %v288
  %vm343 = vcmp.eq.s32.totalorder %v33, %v291
  %vm344 = vcmp.eq.s32.totalorder %v33, %v294
  %vm345 = vcmp.eq.s32.totalorder %v33, %v297
  %vm346 = vcmp.eq.s32.totalorder %v33, %v300
  %vm347 = vcmp.eq.s32.totalorder %v33, %v303
  %vm348 = vcmp.eq.s32.totalorder %v33, %v306
  %vm349 = vcmp.eq.s32.totalorder %v33, %v309
  %vm350 = vcmp.eq.s32.totalorder %v33, %v312
  %vm351 = vcmp.eq.s32.totalorder %v33, %v315
  %vm352 = vcmp.eq.s32.totalorder %v33, %v318
  %vm353 = vcmp.eq.s32.totalorder %v33, %v321
  %vm354 = vmor %vm162, %vm322
  %vm355 = vmor %vm163, %vm323
  %vm356 = vmor %vm164, %vm324
  %vm357 = vmor %vm165, %vm325
  %vm358 = vmor %vm166, %vm326
  %vm359 = vmor %vm167, %vm327
  %vm360 = vmor %vm168, %vm328
  %vm361 = vmor %vm169, %vm329
  %vm362 = vmor %vm170, %vm330
  %vm363 = vmor %vm171, %vm331
  %vm364 = vmor %vm172, %vm332
  %vm365 = vmor %vm173, %vm333
  %vm366 = vmor %vm174, %vm334
  %vm367 = vmor %vm175, %vm335
  %vm368 = vmor %vm176, %vm336
  %vm369 = vmor %vm177, %vm337
  %vm370 = vmor %vm178, %vm338
  %vm371 = vmor %vm179, %vm339
  %vm372 = vmor %vm180, %vm340
  %vm373 = vmor %vm181, %vm341
  %vm374 = vmor %vm182, %vm342
  %vm375 = vmor %vm183, %vm343
  %vm376 = vmor %vm184, %vm344
  %vm377 = vmor %vm185, %vm345
  %vm378 = vmor %vm186, %vm346
  %vm379 = vmor %vm187, %vm347
  %vm380 = vmor %vm188, %vm348
  %vm381 = vmor %vm189, %vm349
  %vm382 = vmor %vm190, %vm350
  %vm383 = vmor %vm191, %vm351
  %vm384 = vmor %vm192, %vm352
  %vm385 = vmor %vm193, %vm353
  %v386 = vsel %vm354, 1, 0
  %v387 = vsel %vm355, 1, 0
  %v388 = vsel %vm356, 1, 0
  %v389 = vsel %vm357, 1, 0
  %v390 = vsel %vm358, 1, 0
  %v391 = vsel %vm359, 1, 0
  %v392 = vsel %vm360, 1, 0
  %v393 = vsel %vm361, 1, 0
  %v394 = vsel %vm362, 1, 0
  %v395 = vsel %vm363, 1, 0
  %v396 = vsel %vm364, 1, 0
  %v397 = vsel %vm365, 1, 0
  %v398 = vsel %vm366, 1, 0
  %v399 = vsel %vm367, 1, 0
  %v400 = vsel %vm368, 1, 0
  %v401 = vsel %vm369, 1, 0
  %v402 = vsel %vm370, 1, 0
  %v403 = vsel %vm371, 1, 0
  %v404 = vsel %vm372, 1, 0
  %v405 = vsel %vm373, 1, 0
  %v406 = vsel %vm374, 1, 0
  %v407 = vsel %vm375, 1, 0
  %v408 = vsel %vm376, 1, 0
  %v409 = vsel %vm377, 1, 0
  %v410 = vsel %vm378, 1, 0
  %v411 = vsel %vm379, 1, 0
  %v412 = vsel %vm380, 1, 0
  %v413 = vsel %vm381, 1, 0
  %v414 = vsel %vm382, 1, 0
  %v415 = vsel %vm383, 1, 0
  %v416 = vsel %vm384, 1, 0
  %v417 = vsel %vm385, 1, 0
  %v418 = vcvt.s32.f32 %v386
  %v419 = vcvt.s32.f32 %v387
  %v420 = vcvt.s32.f32 %v388
  %v421 = vcvt.s32.f32 %v389
  %v422 = vcvt.s32.f32 %v390
  %v423 = vcvt.s32.f32 %v391
  %v424 = vcvt.s32.f32 %v392
  %v425 = vcvt.s32.f32 %v393
  %v426 = vcvt.s32.f32 %v394
  %v427 = vcvt.s32.f32 %v395
  %v428 = vcvt.s32.f32 %v396
  %v429 = vcvt.s32.f32 %v397
  %v430 = vcvt.s32.f32 %v398
  %v431 = vcvt.s32.f32 %v399
  %v432 = vcvt.s32.f32 %v400
  %v433 = vcvt.s32.f32 %v401
  %v434 = vcvt.s32.f32 %v402
  %v435 = vcvt.s32.f32 %v403
  %v436 = vcvt.s32.f32 %v404
  %v437 = vcvt.s32.f32 %v405
  %v438 = vcvt.s32.f32 %v406
  %v439 = vcvt.s32.f32 %v407
  %v440 = vcvt.s32.f32 %v408
  %v441 = vcvt.s32.f32 %v409
  %v442 = vcvt.s32.f32 %v410
  %v443 = vcvt.s32.f32 %v411
  %v444 = vcvt.s32.f32 %v412
  %v445 = vcvt.s32.f32 %v413
  %v446 = vcvt.s32.f32 %v414
  %v447 = vcvt.s32.f32 %v415
  %v448 = vcvt.s32.f32 %v416
  %v449 = vcvt.s32.f32 %v417
  %v450 = vld [vmem:[%s2] sm:$0xff]
  %v451 = vld [vmem:[%s2 + $0x8] sm:$0xff]
  %v452 = vld [vmem:[%s2 + $0x10] sm:$0xff]
  %v453 = vld [vmem:[%s2 + $0x18] sm:$0xff]
  %v454 = vld [vmem:[%s2 + $0x20] sm:$0xff]
  %v455 = vld [vmem:[%s2 + $0x28] sm:$0xff]
  %v456 = vld [vmem:[%s2 + $0x30] sm:$0xff]
  %v457 = vld [vmem:[%s2 + $0x38] sm:$0xff]
  %v458 = vld [vmem:[%s2 + $0x40] sm:$0xff]
  %v459 = vld [vmem:[%s2 + $0x48] sm:$0xff]
  %v460 = vld [vmem:[%s2 + $0x50] sm:$0xff]
  %v461 = vld [vmem:[%s2 + $0x58] sm:$0xff]
  %v462 = vld [vmem:[%s2 + $0x60] sm:$0xff]
  %v463 = vld [vmem:[%s2 + $0x68] sm:$0xff]
  %v464 = vld [vmem:[%s2 + $0x70] sm:$0xff]
  %v465 = vld [vmem:[%s2 + $0x78] sm:$0xff]
  %466 = vmatpush.msra.mxu0 %v465
  %467 = vmatpush.msra.mxu0 %v464
  %468 = vmatpush.msra.mxu0 %v463
  %469 = vmatpush.msra.mxu0 %v462
  %470 = vmatpush.msra.mxu0 %v461
  %471 = vmatpush.msra.mxu0 %v460
  %472 = vmatpush.msra.mxu0 %v459
  %473 = vmatpush.msra.mxu0 %v458
  %474 = vmatpush.msra.mxu0 %v457
  %475 = vmatpush.msra.mxu0 %v456
  %476 = vmatpush.msra.mxu0 %v455
  %477 = vmatpush.msra.mxu0 %v454
  %478 = vmatpush.msra.mxu0 %v453
  %479 = vmatpush.msra.mxu0 %v452
  %480 = vmatpush.msra.mxu0 %v451
  %481 = vmatpush.msra.mxu0 %v450
  %482 = vmatmul.f32.gmra.mxu0 %v418
  %v483 = vpop.f32.mrf.mxu0
  %v484 = vadd.f32 0.0, %v483
  %485 = vmatmul.f32.gmra.mxu0 %v419
  %v486 = vpop.f32.mrf.mxu0
  %v487 = vadd.f32 0.0, %v486
  %488 = vmatmul.f32.gmra.mxu0 %v420
  %v489 = vpop.f32.mrf.mxu0
  %v490 = vadd.f32 0.0, %v489
  %491 = vmatmul.f32.gmra.mxu0 %v421
  %v492 = vpop.f32.mrf.mxu0
  %v493 = vadd.f32 0.0, %v492
  %494 = vmatmul.f32.gmra.mxu0 %v422
  %v495 = vpop.f32.mrf.mxu0
  %v496 = vadd.f32 0.0, %v495
  %497 = vmatmul.f32.gmra.mxu0 %v423
  %v498 = vpop.f32.mrf.mxu0
  %v499 = vadd.f32 0.0, %v498
  %500 = vmatmul.f32.gmra.mxu0 %v424
  %v501 = vpop.f32.mrf.mxu0
  %v502 = vadd.f32 0.0, %v501
  %503 = vmatmul.f32.gmra.mxu0 %v425
  %v504 = vpop.f32.mrf.mxu0
  %v505 = vadd.f32 0.0, %v504
  %506 = vmatmul.f32.gmra.mxu0 %v426
  %v507 = vpop.f32.mrf.mxu0
  %v508 = vadd.f32 0.0, %v507
  %509 = vmatmul.f32.gmra.mxu0 %v427
  %v510 = vpop.f32.mrf.mxu0
  %v511 = vadd.f32 0.0, %v510
  %512 = vmatmul.f32.gmra.mxu0 %v428
  %v513 = vpop.f32.mrf.mxu0
  %v514 = vadd.f32 0.0, %v513
  %515 = vmatmul.f32.gmra.mxu0 %v429
  %v516 = vpop.f32.mrf.mxu0
  %v517 = vadd.f32 0.0, %v516
  %518 = vmatmul.f32.gmra.mxu0 %v430
  %v519 = vpop.f32.mrf.mxu0
  %v520 = vadd.f32 0.0, %v519
  %521 = vmatmul.f32.gmra.mxu0 %v431
  %v522 = vpop.f32.mrf.mxu0
  %v523 = vadd.f32 0.0, %v522
  %524 = vmatmul.f32.gmra.mxu0 %v432
  %v525 = vpop.f32.mrf.mxu0
  %v526 = vadd.f32 0.0, %v525
  %527 = vmatmul.f32.gmra.mxu0 %v433
  %v528 = vpop.f32.mrf.mxu0
  %v529 = vadd.f32 0.0, %v528
  %530 = vmatmul.f32.gmra.mxu0 %v434
  %v531 = vpop.f32.mrf.mxu0
  %v532 = vadd.f32 0.0, %v531
  %533 = vmatmul.f32.gmra.mxu0 %v435
  %v534 = vpop.f32.mrf.mxu0
  %v535 = vadd.f32 0.0, %v534
  %536 = vmatmul.f32.gmra.mxu0 %v436
  %v537 = vpop.f32.mrf.mxu0
  %v538 = vadd.f32 0.0, %v537
  %539 = vmatmul.f32.gmra.mxu0 %v437
  %v540 = vpop.f32.mrf.mxu0
  %v541 = vadd.f32 0.0, %v540
  %542 = vmatmul.f32.gmra.mxu0 %v438
  %v543 = vpop.f32.mrf.mxu0
  %v544 = vadd.f32 0.0, %v543
  %545 = vmatmul.f32.gmra.mxu0 %v439
  %v546 = vpop.f32.mrf.mxu0
  %v547 = vadd.f32 0.0, %v546
  %548 = vmatmul.f32.gmra.mxu0 %v440
  %v549 = vpop.f32.mrf.mxu0
  %v550 = vadd.f32 0.0, %v549
  %551 = vmatmul.f32.gmra.mxu0 %v441
  %v552 = vpop.f32.mrf.mxu0
  %v553 = vadd.f32 0.0, %v552
  %554 = vmatmul.f32.gmra.mxu0 %v442
  %v555 = vpop.f32.mrf.mxu0
  %v556 = vadd.f32 0.0, %v555
  %557 = vmatmul.f32.gmra.mxu0 %v443
  %v558 = vpop.f32.mrf.mxu0
  %v559 = vadd.f32 0.0, %v558
  %560 = vmatmul.f32.gmra.mxu0 %v444
  %v561 = vpop.f32.mrf.mxu0
  %v562 = vadd.f32 0.0, %v561
  %563 = vmatmul.f32.gmra.mxu0 %v445
  %v564 = vpop.f32.mrf.mxu0
  %v565 = vadd.f32 0.0, %v564
  %566 = vmatmul.f32.gmra.mxu0 %v446
  %v567 = vpop.f32.mrf.mxu0
  %v568 = vadd.f32 0.0, %v567
  %569 = vmatmul.f32.gmra.mxu0 %v447
  %v570 = vpop.f32.mrf.mxu0
  %v571 = vadd.f32 0.0, %v570
  %572 = vmatmul.f32.gmra.mxu0 %v448
  %v573 = vpop.f32.mrf.mxu0
  %v574 = vadd.f32 0.0, %v573
  %575 = vmatmul.f32.gmra.mxu0 %v449
  %v576 = vpop.f32.mrf.mxu0
  %v577 = vadd.f32 0.0, %v576
  %578 = vdwg.mxu0
  %v579 = vld [vmem:[%s3] sm:$0xff]
  %v580 = vld [vmem:[%s3 + $0x8] sm:$0xff]
  %v581 = vld [vmem:[%s3 + $0x10] sm:$0xff]
  %v582 = vld [vmem:[%s3 + $0x18] sm:$0xff]
  %v583 = vld [vmem:[%s3 + $0x20] sm:$0xff]
  %v584 = vld [vmem:[%s3 + $0x28] sm:$0xff]
  %v585 = vld [vmem:[%s3 + $0x30] sm:$0xff]
  %v586 = vld [vmem:[%s3 + $0x38] sm:$0xff]
  %v587 = vld [vmem:[%s4] sm:$0x1]
  %v589 = vperm.slane %v587, 0
  %vm591 = vcmask 523264
  %v593 = vsel %vm591, %v484, 0
  %v596 = vsel %vm591, %v487, 0
  %v599 = vsel %vm591, %v490, 0
  %v602 = vsel %vm591, %v493, 0
  %v605 = vsel %vm591, %v496, 0
  %v608 = vsel %vm591, %v499, 0
  %v611 = vsel %vm591, %v502, 0
  %v614 = vsel %vm591, %v505, 0
  %v617 = vsel %vm591, %v508, 0
  %v620 = vsel %vm591, %v511, 0
  %v623 = vsel %vm591, %v514, 0
  %v626 = vsel %vm591, %v517, 0
  %v629 = vsel %vm591, %v520, 0
  %v632 = vsel %vm591, %v523, 0
  %v635 = vsel %vm591, %v526, 0
  %v638 = vsel %vm591, %v529, 0
  %v641 = vsel %vm591, %v532, 0
  %v644 = vsel %vm591, %v535, 0
  %v647 = vsel %vm591, %v538, 0
  %v650 = vsel %vm591, %v541, 0
  %v653 = vsel %vm591, %v544, 0
  %v656 = vsel %vm591, %v547, 0
  %v659 = vsel %vm591, %v550, 0
  %v662 = vsel %vm591, %v553, 0
  %v665 = vsel %vm591, %v556, 0
  %v668 = vsel %vm591, %v559, 0
  %v671 = vsel %vm591, %v562, 0
  %v674 = vsel %vm591, %v565, 0
  %v677 = vsel %vm591, %v568, 0
  %v680 = vsel %vm591, %v571, 0
  %v683 = vsel %vm591, %v574, 0
  %v686 = vsel %vm591, %v577, 0
  %688 = vmatpush.msra.mxu0 0.0
  %689 = vmatpush.msra.mxu0 0.0
  %690 = vmatpush.msra.mxu0 0.0
  %691 = vmatpush.msra.mxu0 0.0
  %692 = vmatpush.msra.mxu0 0.0
  %693 = vmatpush.msra.mxu0 0.0
  %694 = vmatpush.msra.mxu0 0.0
  %695 = vmatpush.msra.mxu0 0.0
  %696 = vmatpush.msra.mxu0 %v586
  %697 = vmatpush.msra.mxu0 %v585
  %698 = vmatpush.msra.mxu0 %v584
  %699 = vmatpush.msra.mxu0 %v583
  %700 = vmatpush.msra.mxu0 %v582
  %701 = vmatpush.msra.mxu0 %v581
  %702 = vmatpush.msra.mxu0 %v580
  %703 = vmatpush.msra.mxu0 %v579
  %704 = vmatmul.f32.gmra.mxu0 %v593
  %v705 = vpop.f32.mrf.mxu0
  %v706 = vadd.f32 %v589, %v705
  %707 = vmatmul.f32.gmra.mxu0 %v596
  %v708 = vpop.f32.mrf.mxu0
  %v709 = vadd.f32 %v589, %v708
  %710 = vmatmul.f32.gmra.mxu0 %v599
  %v711 = vpop.f32.mrf.mxu0
  %v712 = vadd.f32 %v589, %v711
  %713 = vmatmul.f32.gmra.mxu0 %v602
  %v714 = vpop.f32.mrf.mxu0
  %v715 = vadd.f32 %v589, %v714
  %716 = vmatmul.f32.gmra.mxu0 %v605
  %v717 = vpop.f32.mrf.mxu0
  %v718 = vadd.f32 %v589, %v717
  %719 = vmatmul.f32.gmra.mxu0 %v608
  %v720 = vpop.f32.mrf.mxu0
  %v721 = vadd.f32 %v589, %v720
  %722 = vmatmul.f32.gmra.mxu0 %v611
  %v723 = vpop.f32.mrf.mxu0
  %v724 = vadd.f32 %v589, %v723
  %725 = vmatmul.f32.gmra.mxu0 %v614
  %v726 = vpop.f32.mrf.mxu0
  %v727 = vadd.f32 %v589, %v726
  %728 = vmatmul.f32.gmra.mxu0 %v617
  %v729 = vpop.f32.mrf.mxu0
  %v730 = vadd.f32 %v589, %v729
  %731 = vmatmul.f32.gmra.mxu0 %v620
  %v732 = vpop.f32.mrf.mxu0
  %v733 = vadd.f32 %v589, %v732
  %734 = vmatmul.f32.gmra.mxu0 %v623
  %v735 = vpop.f32.mrf.mxu0
  %v736 = vadd.f32 %v589, %v735
  %737 = vmatmul.f32.gmra.mxu0 %v626
  %v738 = vpop.f32.mrf.mxu0
  %v739 = vadd.f32 %v589, %v738
  %740 = vmatmul.f32.gmra.mxu0 %v629
  %v741 = vpop.f32.mrf.mxu0
  %v742 = vadd.f32 %v589, %v741
  %743 = vmatmul.f32.gmra.mxu0 %v632
  %v744 = vpop.f32.mrf.mxu0
  %v745 = vadd.f32 %v589, %v744
  %746 = vmatmul.f32.gmra.mxu0 %v635
  %v747 = vpop.f32.mrf.mxu0
  %v748 = vadd.f32 %v589, %v747
  %749 = vmatmul.f32.gmra.mxu0 %v638
  %v750 = vpop.f32.mrf.mxu0
  %v751 = vadd.f32 %v589, %v750
  %752 = vmatmul.f32.gmra.mxu0 %v641
  %v753 = vpop.f32.mrf.mxu0
  %v754 = vadd.f32 %v589, %v753
  %755 = vmatmul.f32.gmra.mxu0 %v644
  %v756 = vpop.f32.mrf.mxu0
  %v757 = vadd.f32 %v589, %v756
  %758 = vmatmul.f32.gmra.mxu0 %v647
  %v759 = vpop.f32.mrf.mxu0
  %v760 = vadd.f32 %v589, %v759
  %761 = vmatmul.f32.gmra.mxu0 %v650
  %v762 = vpop.f32.mrf.mxu0
  %v763 = vadd.f32 %v589, %v762
  %764 = vmatmul.f32.gmra.mxu0 %v653
  %v765 = vpop.f32.mrf.mxu0
  %v766 = vadd.f32 %v589, %v765
  %767 = vmatmul.f32.gmra.mxu0 %v656
  %v768 = vpop.f32.mrf.mxu0
  %v769 = vadd.f32 %v589, %v768
  %770 = vmatmul.f32.gmra.mxu0 %v659
  %v771 = vpop.f32.mrf.mxu0
  %v772 = vadd.f32 %v589, %v771
  %773 = vmatmul.f32.gmra.mxu0 %v662
  %v774 = vpop.f32.mrf.mxu0
  %v775 = vadd.f32 %v589, %v774
  %776 = vmatmul.f32.gmra.mxu0 %v665
  %v777 = vpop.f32.mrf.mxu0
  %v778 = vadd.f32 %v589, %v777
  %779 = vmatmul.f32.gmra.mxu0 %v668
  %v780 = vpop.f32.mrf.mxu0
  %v781 = vadd.f32 %v589, %v780
  %782 = vmatmul.f32.gmra.mxu0 %v671
  %v783 = vpop.f32.mrf.mxu0
  %v784 = vadd.f32 %v589, %v783
  %785 = vmatmul.f32.gmra.mxu0 %v674
  %v786 = vpop.f32.mrf.mxu0
  %v787 = vadd.f32 %v589, %v786
  %788 = vmatmul.f32.gmra.mxu0 %v677
  %v789 = vpop.f32.mrf.mxu0
  %v790 = vadd.f32 %v589, %v789
  %791 = vmatmul.f32.gmra.mxu0 %v680
  %v792 = vpop.f32.mrf.mxu0
  %v793 = vadd.f32 %v589, %v792
  %794 = vmatmul.f32.gmra.mxu0 %v683
  %v795 = vpop.f32.mrf.mxu0
  %v796 = vadd.f32 %v589, %v795
  %797 = vmatmul.f32.gmra.mxu0 %v686
  %v798 = vpop.f32.mrf.mxu0
  %v799 = vadd.f32 %v589, %v798
  %800 = vdwg.mxu0
  %v801 = vmax.f32 %v706, 0.0
  %v802 = vmax.f32 %v709, 0.0
  %v803 = vmax.f32 %v712, 0.0
  %v804 = vmax.f32 %v715, 0.0
  %v805 = vmax.f32 %v718, 0.0
  %v806 = vmax.f32 %v721, 0.0
  %v807 = vmax.f32 %v724, 0.0
  %v808 = vmax.f32 %v727, 0.0
  %v809 = vmax.f32 %v730, 0.0
  %v810 = vmax.f32 %v733, 0.0
  %v811 = vmax.f32 %v736, 0.0
  %v812 = vmax.f32 %v739, 0.0
  %v813 = vmax.f32 %v742, 0.0
  %v814 = vmax.f32 %v745, 0.0
  %v815 = vmax.f32 %v748, 0.0
  %v816 = vmax.f32 %v751, 0.0
  %v817 = vmax.f32 %v754, 0.0
  %v818 = vmax.f32 %v757, 0.0
  %v819 = vmax.f32 %v760, 0.0
  %v820 = vmax.f32 %v763, 0.0
  %v821 = vmax.f32 %v766, 0.0
  %v822 = vmax.f32 %v769, 0.0
  %v823 = vmax.f32 %v772, 0.0
  %v824 = vmax.f32 %v775, 0.0
  %v825 = vmax.f32 %v778, 0.0
  %v826 = vmax.f32 %v781, 0.0
  %v827 = vmax.f32 %v784, 0.0
  %v828 = vmax.f32 %v787, 0.0
  %v829 = vmax.f32 %v790, 0.0
  %v830 = vmax.f32 %v793, 0.0
  %v831 = vmax.f32 %v796, 0.0
  %v832 = vmax.f32 %v799, 0.0
  %v833 = vlaneseq
  %v834 = vshrl.u32 %v833, 7
  %v835 = vadd.s32 %v834, 8
  %vm836 = vcmp.lt.s32.totalorder %v834, 15
  %vm837 = vcmp.lt.s32.totalorder %v835, 15
  %v838 = vsel %vm836, %v801, 0.0
  %v839 = vsel %vm837, %v802, 0.0
  %v840 = vsel %vm836, %v803, 0.0
  %v841 = vsel %vm837, %v804, 0.0
  %v842 = vsel %vm836, %v805, 0.0
  %v843 = vsel %vm837, %v806, 0.0
  %v844 = vsel %vm836, %v807, 0.0
  %v845 = vsel %vm837, %v808, 0.0
  %v846 = vsel %vm836, %v809, 0.0
  %v847 = vsel %vm837, %v810, 0.0
  %v848 = vsel %vm836, %v811, 0.0
  %v849 = vsel %vm837, %v812, 0.0
  %v850 = vsel %vm836, %v813, 0.0
  %v851 = vsel %vm837, %v814, 0.0
  %v852 = vsel %vm836, %v815, 0.0
  %v853 = vsel %vm837, %v816, 0.0
  %v854 = vsel %vm836, %v817, 0.0
  %v855 = vsel %vm837, %v818, 0.0
  %v856 = vsel %vm836, %v819, 0.0
  %v857 = vsel %vm837, %v820, 0.0
  %v858 = vsel %vm836, %v821, 0.0
  %v859 = vsel %vm837, %v822, 0.0
  %v860 = vsel %vm836, %v823, 0.0
  %v861 = vsel %vm837, %v824, 0.0
  %v862 = vsel %vm836, %v825, 0.0
  %v863 = vsel %vm837, %v826, 0.0
  %v864 = vsel %vm836, %v827, 0.0
  %v865 = vsel %vm837, %v828, 0.0
  %v866 = vsel %vm836, %v829, 0.0
  %v867 = vsel %vm837, %v830, 0.0
  %v868 = vsel %vm836, %v831, 0.0
  %v869 = vsel %vm837, %v832, 0.0
  %vm870 = vcmask 261120
  %v871 = vsel %vm870, %v838, -inf
  %v872 = vsel %vm870, %v839, -inf
  %v873 = vmax.f32 %v871, %v872
  %v874 = vrot.slane %v873, 4
  %v875 = vmax.f32 %v873, %v874
  %v876 = vrot.slane %v875, 2
  %v877 = vmax.f32 %v875, %v876
  %v878 = vrot.slane %v877, 1
  %v879 = vmax.f32 %v877, %v878
  %v880 = vsel %vm870, %v840, -inf
  %v881 = vsel %vm870, %v841, -inf
  %v882 = vmax.f32 %v880, %v881
  %v883 = vrot.slane %v882, 4
  %v884 = vmax.f32 %v882, %v883
  %v885 = vrot.slane %v884, 2
  %v886 = vmax.f32 %v884, %v885
  %v887 = vrot.slane %v886, 1
  %v888 = vmax.f32 %v886, %v887
  %v889 = vsel %vm870, %v842, -inf
  %v890 = vsel %vm870, %v843, -inf
  %v891 = vmax.f32 %v889, %v890
  %v892 = vrot.slane %v891, 4
  %v893 = vmax.f32 %v891, %v892
  %v894 = vrot.slane %v893, 2
  %v895 = vmax.f32 %v893, %v894
  %v896 = vrot.slane %v895, 1
  %v897 = vmax.f32 %v895, %v896
  %v898 = vsel %vm870, %v844, -inf
  %v899 = vsel %vm870, %v845, -inf
  %v900 = vmax.f32 %v898, %v899
  %v901 = vrot.slane %v900, 4
  %v902 = vmax.f32 %v900, %v901
  %v903 = vrot.slane %v902, 2
  %v904 = vmax.f32 %v902, %v903
  %v905 = vrot.slane %v904, 1
  %v906 = vmax.f32 %v904, %v905
  %v907 = vsel %vm870, %v846, -inf
  %v908 = vsel %vm870, %v847, -inf
  %v909 = vmax.f32 %v907, %v908
  %v910 = vrot.slane %v909, 4
  %v911 = vmax.f32 %v909, %v910
  %v912 = vrot.slane %v911, 2
  %v913 = vmax.f32 %v911, %v912
  %v914 = vrot.slane %v913, 1
  %v915 = vmax.f32 %v913, %v914
  %v916 = vsel %vm870, %v848, -inf
  %v917 = vsel %vm870, %v849, -inf
  %v918 = vmax.f32 %v916, %v917
  %v919 = vrot.slane %v918, 4
  %v920 = vmax.f32 %v918, %v919
  %v921 = vrot.slane %v920, 2
  %v922 = vmax.f32 %v920, %v921
  %v923 = vrot.slane %v922, 1
  %v924 = vmax.f32 %v922, %v923
  %v925 = vsel %vm870, %v850, -inf
  %v926 = vsel %vm870, %v851, -inf
  %v927 = vmax.f32 %v925, %v926
  %v928 = vrot.slane %v927, 4
  %v929 = vmax.f32 %v927, %v928
  %v930 = vrot.slane %v929, 2
  %v931 = vmax.f32 %v929, %v930
  %v932 = vrot.slane %v931, 1
  %v933 = vmax.f32 %v931, %v932
  %v934 = vsel %vm870, %v852, -inf
  %v935 = vsel %vm870, %v853, -inf
  %v936 = vmax.f32 %v934, %v935
  %v937 = vrot.slane %v936, 4
  %v938 = vmax.f32 %v936, %v937
  %v939 = vrot.slane %v938, 2
  %v940 = vmax.f32 %v938, %v939
  %v941 = vrot.slane %v940, 1
  %v942 = vmax.f32 %v940, %v941
  %v943 = vsel %vm870, %v854, -inf
  %v944 = vsel %vm870, %v855, -inf
  %v945 = vmax.f32 %v943, %v944
  %v946 = vrot.slane %v945, 4
  %v947 = vmax.f32 %v945, %v946
  %v948 = vrot.slane %v947, 2
  %v949 = vmax.f32 %v947, %v948
  %v950 = vrot.slane %v949, 1
  %v951 = vmax.f32 %v949, %v950
  %v952 = vsel %vm870, %v856, -inf
  %v953 = vsel %vm870, %v857, -inf
  %v954 = vmax.f32 %v952, %v953
  %v955 = vrot.slane %v954, 4
  %v956 = vmax.f32 %v954, %v955
  %v957 = vrot.slane %v956, 2
  %v958 = vmax.f32 %v956, %v957
  %v959 = vrot.slane %v958, 1
  %v960 = vmax.f32 %v958, %v959
  %v961 = vsel %vm870, %v858, -inf
  %v962 = vsel %vm870, %v859, -inf
  %v963 = vmax.f32 %v961, %v962
  %v964 = vrot.slane %v963, 4
  %v965 = vmax.f32 %v963, %v964
  %v966 = vrot.slane %v965, 2
  %v967 = vmax.f32 %v965, %v966
  %v968 = vrot.slane %v967, 1
  %v969 = vmax.f32 %v967, %v968
  %v970 = vsel %vm870, %v860, -inf
  %v971 = vsel %vm870, %v861, -inf
  %v972 = vmax.f32 %v970, %v971
  %v973 = vrot.slane %v972, 4
  %v974 = vmax.f32 %v972, %v973
  %v975 = vrot.slane %v974, 2
  %v976 = vmax.f32 %v974, %v975
  %v977 = vrot.slane %v976, 1
  %v978 = vmax.f32 %v976, %v977
  %v979 = vsel %vm870, %v862, -inf
  %v980 = vsel %vm870, %v863, -inf
  %v981 = vmax.f32 %v979, %v980
  %v982 = vrot.slane %v981, 4
  %v983 = vmax.f32 %v981, %v982
  %v984 = vrot.slane %v983, 2
  %v985 = vmax.f32 %v983, %v984
  %v986 = vrot.slane %v985, 1
  %v987 = vmax.f32 %v985, %v986
  %v988 = vsel %vm870, %v864, -inf
  %v989 = vsel %vm870, %v865, -inf
  %v990 = vmax.f32 %v988, %v989
  %v991 = vrot.slane %v990, 4
  %v992 = vmax.f32 %v990, %v991
  %v993 = vrot.slane %v992, 2
  %v994 = vmax.f32 %v992, %v993
  %v995 = vrot.slane %v994, 1
  %v996 = vmax.f32 %v994, %v995
  %v997 = vsel %vm870, %v866, -inf
  %v998 = vsel %vm870, %v867, -inf
  %v999 = vmax.f32 %v997, %v998
  %v1000 = vrot.slane %v999, 4
  %v1001 = vmax.f32 %v999, %v1000
  %v1002 = vrot.slane %v1001, 2
  %v1003 = vmax.f32 %v1001, %v1002
  %v1004 = vrot.slane %v1003, 1
  %v1005 = vmax.f32 %v1003, %v1004
  %v1006 = vsel %vm870, %v868, -inf
  %v1007 = vsel %vm870, %v869, -inf
  %v1008 = vmax.f32 %v1006, %v1007
  %v1009 = vrot.slane %v1008, 4
  %v1010 = vmax.f32 %v1008, %v1009
  %v1011 = vrot.slane %v1010, 2
  %v1012 = vmax.f32 %v1010, %v1011
  %v1013 = vrot.slane %v1012, 1
  %v1014 = vmax.f32 %v1012, %v1013
  %v1015 = vld [vmem:[%s5] sm:$0xff]
  %v1016 = vld [vmem:[%s5 + $0x8] sm:$0xff]
  %v1017 = vld [vmem:[%s5 + $0x10] sm:$0xff]
  %v1018 = vld [vmem:[%s5 + $0x18] sm:$0xff]
  %v1019 = vld [vmem:[%s6] sm:$0x1]
  %v1021 = vperm.slane %v1019, 0
  %vm1039 = vcmask 1041409
  %v1040 = vsel %vm1039, %v888, %v879
  %vm1041 = vcmask 1042434
  %v1042 = vsel %vm1041, %v897, %v1040
  %vm1043 = vcmask 1043459
  %v1044 = vsel %vm1043, %v906, %v1042
  %vm1045 = vcmask 1044484
  %v1046 = vsel %vm1045, %v915, %v1044
  %vm1047 = vcmask 1045509
  %v1048 = vsel %vm1047, %v924, %v1046
  %vm1049 = vcmask 1046534
  %v1050 = vsel %vm1049, %v933, %v1048
  %vm1051 = vcmask 1047559
  %v1052 = vsel %vm1051, %v942, %v1050
  %v1053 = vsel %vm1039, %v960, %v951
  %v1054 = vsel %vm1041, %v969, %v1053
  %v1055 = vsel %vm1043, %v978, %v1054
  %v1056 = vsel %vm1045, %v987, %v1055
  %v1057 = vsel %vm1047, %v996, %v1056
  %v1058 = vsel %vm1049, %v1005, %v1057
  %v1059 = vsel %vm1051, %v1014, %v1058
  %v1060 = vsel %vm870, %v1052, 0
  %v1062 = vsel %vm870, %v1059, 0
  %1064 = vmatpush.msra.mxu0 0.0
  %1065 = vmatpush.msra.mxu0 0.0
  %1066 = vmatpush.msra.mxu0 0.0
  %1067 = vmatpush.msra.mxu0 0.0
  %1068 = vmatpush.msra.mxu0 0.0
  %1069 = vmatpush.msra.mxu0 0.0
  %1070 = vmatpush.msra.mxu0 0.0
  %1071 = vmatpush.msra.mxu0 0.0
  %1072 = vmatpush.msra.mxu0 0.0
  %1073 = vmatpush.msra.mxu0 0.0
  %1074 = vmatpush.msra.mxu0 0.0
  %1075 = vmatpush.msra.mxu0 0.0
  %1076 = vmatpush.msra.mxu0 %v1018
  %1077 = vmatpush.msra.mxu0 %v1017
  %1078 = vmatpush.msra.mxu0 %v1016
  %1079 = vmatpush.msra.mxu0 %v1015
  %1080 = vmatmul.f32.gmra.mxu0 %v1060
  %v1081 = vpop.f32.mrf.mxu0
  %v1082 = vadd.f32 %v1021, %v1081
  %1083 = vmatmul.f32.gmra.mxu0 %v1062
  %v1084 = vpop.f32.mrf.mxu0
  %v1085 = vadd.f32 %v1021, %v1084
  %1086 = vdwg.mxu0
  %v1087 = vmax.f32 %v1082, 0.0
  %v1088 = vmax.f32 %v1085, 0.0
  %v1089 = vld [vmem:[%s7] sm:$0xff]
  %v1090 = vld [vmem:[%s7 + $0x8] sm:$0xff]
  %v1091 = vld [vmem:[%s7 + $0x10] sm:$0xff]
  %v1092 = vld [vmem:[%s7 + $0x18] sm:$0xff]
  %v1093 = vld [vmem:[%s8] sm:$0x1]
  %v1095 = vperm.slane %v1093, 0
  %v1098 = vsel %vm870, %v1087, 0
  %v1101 = vsel %vm870, %v1088, 0
  %1103 = vmatpush.msra.mxu0 0.0
  %1104 = vmatpush.msra.mxu0 0.0
  %1105 = vmatpush.msra.mxu0 0.0
  %1106 = vmatpush.msra.mxu0 0.0
  %1107 = vmatpush.msra.mxu0 0.0
  %1108 = vmatpush.msra.mxu0 0.0
  %1109 = vmatpush.msra.mxu0 0.0
  %1110 = vmatpush.msra.mxu0 0.0
  %1111 = vmatpush.msra.mxu0 0.0
  %1112 = vmatpush.msra.mxu0 0.0
  %1113 = vmatpush.msra.mxu0 0.0
  %1114 = vmatpush.msra.mxu0 0.0
  %1115 = vmatpush.msra.mxu0 %v1092
  %1116 = vmatpush.msra.mxu0 %v1091
  %1117 = vmatpush.msra.mxu0 %v1090
  %1118 = vmatpush.msra.mxu0 %v1089
  %1119 = vmatmul.f32.gmra.mxu0 %v1098
  %v1120 = vpop.f32.mrf.mxu0
  %v1121 = vadd.f32 %v1095, %v1120
  %1122 = vmatmul.f32.gmra.mxu0 %v1101
  %v1123 = vpop.f32.mrf.mxu0
  %v1124 = vadd.f32 %v1095, %v1123
  %1125 = vdwg.mxu0
  %1126 = vmax.xlane.f32.xlu0 %v1121
  %v1127 = vpop.xlane.xlu0 %1126
  %1128 = vmax.xlane.f32.xlu0 %v1124
  %v1129 = vpop.xlane.xlu0 %1128
  %v1130 = vsub.f32 %v1121, %v1127
  %v1131 = vsub.f32 %v1124, %v1129
  %v1132 = vmul.f32 %v1130, 1.442695
  %v1133 = vpow.pop %v1132
  %v1134 = vmul.f32 %v1131, 1.442695
  %v1135 = vpow.pop %v1134
  %1136 = vadd.xlane.f32.xlu0 %v1133
  %v1137 = vpop.xlane.xlu0 %1136
  %1138 = vadd.xlane.f32.xlu0 %v1135
  %v1139 = vpop.xlane.xlu0 %1138
  %v1140 = vrcp.pop %v1137
  %v1141 = vmul.f32 %v1137, %v1140
  %v1142 = vsub.f32 1.0, %v1141
  %v1143 = vmul.f32 %v1140, %v1142
  %v1144 = vadd.f32 %v1140, %v1143
  %vm1145 = vweird.f32 %v1137
  %vm1146 = vweird.f32 %v1140
  %vm1147 = vmor %vm1145, %vm1146
  %v1148 = vsel %vm1147, %v1140, %v1144
  %v1149 = vand.u32 2147483647, %v1137
  %vm1150 = vcmp.eq.f32.partialorder %v1149, 8.507059e+37
  %v1151 = vand.u32 %v1137, 2147483648
  %v1152 = vor.u32 1.1754944e-38, %v1151
  %v1153 = vsel %vm1150, %v1152, %v1148
  %v1154 = vrcp.pop %v1139
  %v1155 = vmul.f32 %v1139, %v1154
  %v1156 = vsub.f32 1.0, %v1155
  %v1157 = vmul.f32 %v1154, %v1156
  %v1158 = vadd.f32 %v1154, %v1157
  %vm1159 = vweird.f32 %v1139
  %vm1160 = vweird.f32 %v1154
  %vm1161 = vmor %vm1159, %vm1160
  %v1162 = vsel %vm1161, %v1154, %v1158
  %v1163 = vand.u32 2147483647, %v1139
  %vm1164 = vcmp.eq.f32.partialorder %v1163, 8.507059e+37
  %v1165 = vand.u32 %v1139, 2147483648
  %v1166 = vor.u32 1.1754944e-38, %v1165
  %v1167 = vsel %vm1164, %v1166, %v1162
  %v1168 = vmul.f32 %v1133, %v1153
  %v1169 = vmul.f32 %v1135, %v1167
  %1170 = vst [vmem:[%s9] sm:$0xff] %v1168
  %1171 = vst [vmem:[%s9 + $0x8] sm:$0xff] %v1169
  // Predicated region
  $region38: #{cnn_simple_forward.1} parent=0 // pred_check
    _
  $region39: #{cnn_simple_forward.1} parent=0 // pred_check_branch
    %1173 = sbr.rel (0) target = $region41
  $region40: #{cnn_simple_forward.1} parent=0 // pred_region
    _
  $region41: #{cnn_simple_forward.1} parent=0 // pred_fallthru
    _
  // Predicated region
  $region42: #{cnn_simple_forward.1} parent=0 // pred_check
    _
  $region43: #{cnn_simple_forward.1} parent=0 // pred_check_branch
    %1175 = sbr.rel (0) target = $region45
  $region44: #{cnn_simple_forward.1} parent=0 // pred_region
    _
  $region45: #{cnn_simple_forward.1} parent=0 // pred_fallthru
    _

</llo_original>
